<compile_context>
chip_gen: v5e
topology: v5e:2x2
jax: 0.10.0
libtpu: 0.0.40
codegen_flags: <defaults>
</compile_context>

<pallas_src>
import jax
import jax.numpy as jnp
from jax.experimental import pallas as pl
from jax.experimental.pallas import tpu as pltpu


def _split_heads_kernel(x_ref, o_ref):
    # x_ref block: (TB, H, D) == x3[bb*TB:(bb+1)*TB, :, :]   (one contiguous DMA)
    # o_ref block: (H, TB, D) == out[0, :, bb*TB:(bb+1)*TB, :]
    # The batch<->head swap is a sublane-axis permutation; XLU/VPU slots are
    # idle in this DMA-bound copy, so it hides completely under the transfers.
    o_ref[...] = jnp.swapaxes(x_ref[...], 0, 1)


def _sublane_align(itemsize):
    # Sub-32-bit dtypes pack along sublanes: keep batch tiles at 8 rows for
    # f32, 16 for bf16/f16, 32 for int8/fp8 so block edges stay unmasked.
    return max(8, 32 // max(1, itemsize))


def _pick_batch_tile(B, H, D, itemsize, budget_bytes):
    """Largest batch tile whose double-buffered in+out blocks fit the budget.

    Prefers (a) the whole batch in one block, else (b) an aligned tile that
    divides B exactly (no masked tail step), else (c) an aligned tile with a
    masked tail block.
    """
    per_row = 4 * H * D * itemsize      # 2 input bufs + 2 output bufs per batch row
    align = _sublane_align(itemsize)
    tb = max(1, budget_bytes // per_row)
    if tb >= B:
        return B
    tb = (tb // align) * align
    if tb < align:
        return align                     # smallest aligned tile; may slightly exceed budget
    # prefer an exact divisor of B so the last grid step is not a partial block
    t = tb
    while t >= align:
        if B % t == 0:
            return t
        t -= align
    return tb


def split_heads(x, num_heads, *, vmem_budget_bytes=12 * 1024 * 1024):
    """(B, H*D) -> (1, H, B, D), matching SplitHeads.forward."""
    B, HD = x.shape
    H = num_heads
    assert HD % H == 0, (HD, H)
    D = HD // H
    itemsize = x.dtype.itemsize

    # Free: pure split of the contiguous last axis, no data movement.
    x3 = x.reshape(B, H, D)

    TB = _pick_batch_tile(B, H, D, itemsize, vmem_budget_bytes)

    # Large arrays: keep >=2 parallel grid steps so v7x's two TensorCores (and
    # their DMA issue paths) both participate.  Tiny arrays (like the demo)
    # stay single-step so the per-step overhead is paid exactly once.
    align = _sublane_align(itemsize)
    total_bytes = B * H * D * itemsize
    if TB >= B and total_bytes > (2 << 20) and B % (2 * align) == 0:
        TB = B // 2

    grid = (pl.cdiv(B, TB),)

    # TODO(synk): for models with D % 128 != 0 (e.g. head_dim 64), present the
    # output lane-dense as (H, B*D) and reshape afterwards to avoid masked
    # partial stores; the demo shape (D=128) does not need it.
    return pl.pallas_call(
        _split_heads_kernel,
        out_shape=jax.ShapeDtypeStruct((1, H, B, D), x.dtype),
        grid=grid,
        in_specs=[
            # one fully contiguous (TB, H, D) transfer per grid step
            pl.BlockSpec((TB, H, D), lambda bb: (bb, 0, 0)),
        ],
        out_specs=pl.BlockSpec(
            # (1, H, TB, D) block; the leading size-1 dim is squeezed out
            (None, H, TB, D), lambda bb: (0, 0, bb, 0)
        ),
        compiler_params=pltpu.CompilerParams(
            # every grid step writes a distinct output block -> fully parallel
            dimension_semantics=("parallel",),
            # explicit cap: the <=12 MiB double-buffered footprint fits every
            # generation's default scoped VMEM, and this makes the limit
            # explicit so a retuned budget cannot silently exceed v7x's
            # 64 MiB physical VMEM.
            vmem_limit_bytes=32 * 1024 * 1024,
        ),
        cost_estimate=pl.CostEstimate(
            flops=0,
            transcendentals=0,
            bytes_accessed=2 * B * H * D * itemsize,
        ),
    )(x3)


def split_heads_ref(x, num_heads):
    """Pure-JAX reference mirroring the PyTorch forward exactly."""
    b, hd = x.shape
    h = num_heads
    d = hd // h
    y = x.reshape(b, h, d)[None]           # (1, b, h, d)
    return jnp.transpose(y, (0, 2, 1, 3))  # (1, h, b, d)


if __name__ == "__main__":
    key = jax.random.PRNGKey(0)
    # SplitHeads has no learnable parameters; only num_heads.
    B, H, D = 8, 4, 128
    x = jax.random.normal(key, (B, H * D), dtype=jnp.float32)

    out = jax.block_until_ready(split_heads(x, H))
    expected = split_heads_ref(x, H)

    assert out.shape == (1, H, B, D), out.shape
    assert out.dtype == x.dtype
    assert jnp.allclose(out, expected), "Pallas SplitHeads mismatch vs reference"
    print("KERNEL_OK")
</pallas_src>

<mosaic_0001>
module attributes {stable_mosaic.version = 11 : i64} {
  func.func @_split_heads_kernel(%arg0: i32, %arg1: memref<8x4x128xf32, #tpu.memory_space<vmem>>, %arg2: memref<1x4x8x128xf32, #tpu.memory_space<vmem>>) attributes {dimension_semantics = [#tpu.dimension_semantics<parallel>], iteration_bounds = array<i64: 1>, scalar_prefetch = 0 : i64, scratch_operands = 0 : i64, tpu.core_type = #tpu.core_type<tc>, window_params = [{transform_indices = @transform_0, window_bounds = array<i64: 8, 4, 128>}, {transform_indices = @transform_1, window_bounds = array<i64: 1, 4, 8, 128>}]} {
    %c0 = arith.constant 0 : index
    %c0_0 = arith.constant 0 : index
    %c0_1 = arith.constant 0 : index
    %0 = vector.load %arg1[%c0, %c0_0, %c0_1] : memref<8x4x128xf32, #tpu.memory_space<vmem>>, vector<8x4x128xf32>
    %1 = tpu.transpose %0, [1, 0, 2] : vector<8x4x128xf32> -> vector<4x8x128xf32>
    %c0_2 = arith.constant 0 : index
    %c0_3 = arith.constant 0 : index
    %c0_4 = arith.constant 0 : index
    %c0_5 = arith.constant 0 : index
    %2 = vector.load %arg2[%c0_2, %c0_3, %c0_4, %c0_5] : memref<1x4x8x128xf32, #tpu.memory_space<vmem>>, vector<1x4x8x128xf32>
    %3 = vector.shape_cast %2 : vector<1x4x8x128xf32> to vector<4x8x128xf32>
    %4 = vector.shape_cast %1 : vector<4x8x128xf32> to vector<1x4x8x128xf32>
    tpu.vector_store %arg2[%c0_2, %c0_3, %c0_4, %c0_5], %4 {strides = array<i32>} : memref<1x4x8x128xf32, #tpu.memory_space<vmem>>, vector<1x4x8x128xf32>,
    return
  }
  func.func @transform_0(%arg0: i32) -> (i32, i32, i32) {
    %c0_i32 = arith.constant 0 : i32
    %c0_i32_0 = arith.constant 0 : i32
    %c0_i32_1 = arith.constant 0 : i32
    return %arg0, %c0_i32, %c0_i32_0 : i32, i32, i32
  }
  func.func @transform_1(%arg0: i32) -> (i32, i32, i32, i32) {
    %c0_i32 = arith.constant 0 : i32
    %c0_i32_0 = arith.constant 0 : i32
    %c0_i32_1 = arith.constant 0 : i32
    %c0_i32_2 = arith.constant 0 : i32
    return %c0_i32, %c0_i32_0, %arg0, %c0_i32_1 : i32, i32, i32, i32
  }
}

</mosaic_0001>

<llo_original>
// kernel: tpu_custom_call.1
$region0: #{tpu_custom_call.1}
  #allocation0 [shape = 'u32[]', space=smem, size = 0x4, offset = 0x4, fixed_abs, tag = 'smem constant byte address 0x4 - core index']
  #allocation1 [shape = 'u32[72,128]{1,0:T(1,128)}', space=vmem, size = 0x9000, scoped, tag = 'internal scratch']
  %s0 = inlined_call_operand.hbm [shape: f32[8,4,128], index: 0, kind: input, shape index: {}]
  %s1 = inlined_call_operand.hbm [shape: f32[1,4,8,128], index: 1, kind: output, shape index: {}]
  %s2 = sld [smem:[#allocation0]]
  $region18: #{tpu_custom_call.1} parent=0
    _
  %s4 = ssub.s32 1, %s2
  %s5 = scalar_select 0, %s4, %s2
  $region1: #{tpu_custom_call.1} parent=0
    #allocation2 [shape = 'u8[16384]{0}', space=vmem, size = 0x4000, scoped, tag = 'input window, operand 0, single buffered']
    #allocation3 [shape = 's32[1]{0}', space=sflag, size = 0x4, scoped, tag = 'scoped memory for tpu_custom_call.1']
    #allocation4 [shape = 's32[1]{0}', space=sflag, size = 0x4, scoped, tag = 'scoped memory for tpu_custom_call.1']
    #allocation5 [shape = 'u8[16384]{0}', space=vmem, size = 0x4000, scoped, tag = 'output window, operand 0, single buffered']
    %6 = vsyncpa [#allocation3], 0
    %7 = vsyncpa [#allocation4], 0
    // Predicated region
    $region2: #{tpu_custom_call.1} parent=1 // pred_check
      _
    $region3: #{tpu_custom_call.1} parent=1 // pred_check_branch
      %9 = sbr.rel (0) target = $region5
    $region4: #{tpu_custom_call.1} parent=1 // pred_region
      %11 = vsyncadd [#allocation3], 0
      %s12 = sshll.u32 %s0, 4
      %s13 = int_to_ptr.hbm [resolvable:$true] %s12
      %s14 = sshll.u32 [#allocation2], 4
      %s15 = int_to_ptr.vmem [resolvable:$true] %s14
      %20 = dma.hbm_to_vmem [thread:$0]  %s13, 512, %s15, [#allocation3], 64, 64, 4
    $region5: #{tpu_custom_call.1} parent=1 // pred_fallthru
      _
    // Predicated region
    $region6: #{tpu_custom_call.1} parent=1 // pred_check
      _
    $region7: #{tpu_custom_call.1} parent=1 // pred_check_branch
      %22 = sbr.rel (0) target = $region9
    $region8: #{tpu_custom_call.1} parent=1 // pred_region
      %24 = dma.done [#allocation3], 512
    $region9: #{tpu_custom_call.1} parent=1 // pred_fallthru
      _
    %v25 = vld [vmem:[#allocation2] sm:$0xf]
    %v26 = vld [vmem:[#allocation2 + $0x4] sm:$0xf]
    %v27 = vld [vmem:[#allocation2 + $0x8] sm:$0xf]
    %v28 = vld [vmem:[#allocation2 + $0xc] sm:$0xf]
    %v29 = vld [vmem:[#allocation2 + $0x10] sm:$0xf]
    %v30 = vld [vmem:[#allocation2 + $0x14] sm:$0xf]
    %v31 = vld [vmem:[#allocation2 + $0x18] sm:$0xf]
    %v32 = vld [vmem:[#allocation2 + $0x1c] sm:$0xf]
    %v33 = vrot.slane %v27, 4
    %vm34 = vcmask 1047556
    %v35 = vsel %vm34, %v33, %v25
    %v37 = vunpack.c.l.s4 1983009808
    %v38 = vunpack.c.0.s8 %v37
    %v39 = vperm.slane %v35, %v38
    %v40 = vrot.slane %v28, 4
    %v41 = vsel %vm34, %v40, %v26
    %v43 = vunpack.c.l.s4 1983009808
    %v44 = vunpack.c.0.s8 %v43
    %v45 = vperm.slane %v41, %v44
    %v46 = vrot.slane %v31, 4
    %v47 = vsel %vm34, %v46, %v29
    %v49 = vunpack.c.l.s4 1983009808
    %v50 = vunpack.c.0.s8 %v49
    %v51 = vperm.slane %v47, %v50
    %v52 = vrot.slane %v32, 4
    %v53 = vsel %vm34, %v52, %v30
    %v55 = vunpack.c.l.s4 1983009808
    %v56 = vunpack.c.0.s8 %v55
    %v57 = vperm.slane %v53, %v56
    %v58 = vrot.slane %v45, 4
    %v59 = vsel %vm34, %v58, %v39
    %v60 = vrot.slane %v39, 4
    %v61 = vsel %vm34, %v45, %v60
    %v63 = vunpack.c.l.s4 1934713408
    %v64 = vunpack.c.0.s8 %v63
    %v65 = vperm.slane %v59, %v64
    %v67 = vunpack.c.l.s4 1934713408
    %v68 = vunpack.c.0.s8 %v67
    %v69 = vperm.slane %v61, %v68
    %v70 = vrot.slane %v57, 4
    %v71 = vsel %vm34, %v70, %v51
    %v72 = vrot.slane %v51, 4
    %v73 = vsel %vm34, %v57, %v72
    %v75 = vunpack.c.l.s4 1934713408
    %v76 = vunpack.c.0.s8 %v75
    %v77 = vperm.slane %v71, %v76
    %v79 = vunpack.c.l.s4 1934713408
    %v80 = vunpack.c.0.s8 %v79
    %v81 = vperm.slane %v73, %v80
    %v82 = vrot.slane %v77, 4
    %v83 = vsel %vm34, %v82, %v65
    %v84 = vrot.slane %v65, 4
    %v85 = vsel %vm34, %v77, %v84
    %v86 = vrot.slane %v81, 4
    %v87 = vsel %vm34, %v86, %v69
    %v88 = vrot.slane %v69, 4
    %v89 = vsel %vm34, %v81, %v88
    %90 = vst [vmem:[#allocation5] sm:$0xff] %v83
    %91 = vst [vmem:[#allocation5 + $0x8] sm:$0xff] %v85
    %92 = vst [vmem:[#allocation5 + $0x10] sm:$0xff] %v87
    %93 = vst [vmem:[#allocation5 + $0x18] sm:$0xff] %v89
    // Predicated region
    $region10: #{tpu_custom_call.1} parent=1 // pred_check
      _
    $region11: #{tpu_custom_call.1} parent=1 // pred_check_branch
      %95 = sbr.rel (0) target = $region13
    $region12: #{tpu_custom_call.1} parent=1 // pred_region
      %97 = vsyncadd [#allocation4], 0
      %s98 = sshll.u32 [#allocation5], 4
      %s99 = int_to_ptr.vmem [resolvable:$true] %s98
      %s100 = sshll.u32 %s1, 4
      %s101 = int_to_ptr.hbm [resolvable:$true] %s100
      %106 = dma.vmem_to_hbm [thread:$0]  %s99, 512, %s101, [#allocation4], 128, 128, 8
    $region13: #{tpu_custom_call.1} parent=1 // pred_fallthru
      _
    // Predicated region
    $region14: #{tpu_custom_call.1} parent=1 // pred_check
      _
    $region15: #{tpu_custom_call.1} parent=1 // pred_check_branch
      %108 = sbr.rel (0) target = $region17
    $region16: #{tpu_custom_call.1} parent=1 // pred_region
      %110 = dma.done [#allocation4], 512
    $region17: #{tpu_custom_call.1} parent=1 // pred_fallthru
      _
    %111 = vsyncpa [#allocation3], 1
    %112 = vsyncpa [#allocation4], 1

</llo_original>
